<compile_context>
chip_gen: v6e
topology: v6e:2x2x1
jax: 0.10.0
libtpu: 0.0.40
codegen_flags: <defaults>
</compile_context>

<pallas_src>
import functools
import math

import jax
import jax.numpy as jnp
from jax.experimental import pallas as pl
from jax.experimental.pallas import tpu as pltpu


def _round_up(x, m):
    return (x + m - 1) // m * m


# ----------------------------- kernels --------------------------------------


def conv_bias_stats_kernel(m_true, tm, taps_ref, w_ref, b_ref, acc_ref, stats_ref):
    """3x3 conv as one folded-tap MXU matmul + bias.

    Emits the conv result tile (f32) and per-tile BN partial sums
    (sum, sum of squares) for the two-pass batch-norm."""
    acc = jnp.dot(taps_ref[...], w_ref[...], preferred_element_type=jnp.float32)
    acc = acc + b_ref[...]
    # Rows beyond the true M are padding (M rounded up to the tile); zero them
    # so they do not pollute the batch statistics (and they get sliced off
    # in the wrapper anyway).
    row = pl.program_id(0) * tm + jax.lax.broadcasted_iota(jnp.int32, (tm, 1), 0)
    acc = jnp.where(row < m_true, acc, 0.0)
    acc_ref[...] = acc
    s = jnp.sum(acc, axis=0, keepdims=True)
    ss = jnp.sum(acc * acc, axis=0, keepdims=True)
    stats_ref[...] = jnp.concatenate([s, ss], axis=0)[None]


def _finalize_stats(stats_ref, m_true):
    s = jnp.sum(stats_ref[...], axis=0)            # (2, Cout)
    mean = s[0:1] / m_true
    var = s[1:2] / m_true - mean * mean            # biased variance (training BN)
    rstd = jax.lax.rsqrt(var + 1e-5)
    return mean, rstd


def bn_relu_kernel(m_true, acc_ref, stats_ref, gb_ref, y_ref):
    mean, rstd = _finalize_stats(stats_ref, m_true)
    y = (acc_ref[...] - mean) * (rstd * gb_ref[0:1]) + gb_ref[1:2]
    y_ref[...] = jnp.maximum(y, 0.0).astype(y_ref.dtype)


def bn_add_relu_kernel(m_true, use_conv3, *refs):
    if use_conv3:
        acc_ref, stats_ref, gb_ref, sc_ref, w3_ref, b3_ref, out_ref = refs
    else:
        acc_ref, stats_ref, gb_ref, sc_ref, out_ref = refs
    mean, rstd = _finalize_stats(stats_ref, m_true)
    y = (acc_ref[...] - mean) * (rstd * gb_ref[0:1]) + gb_ref[1:2]
    if use_conv3:
        sc = jnp.dot(sc_ref[...], w3_ref[...],
                     preferred_element_type=jnp.float32) + b3_ref[...]
    else:
        sc = sc_ref[...].astype(jnp.float32)
    out_ref[...] = jnp.maximum(y + sc, 0.0)


# ----------------------------- pallas_call wrappers ---------------------------

_PARALLEL = pltpu.CompilerParams(dimension_semantics=("parallel",))


def _conv_bias_stats(taps, w, b, m_true, tm):
    m_pad, k_pad = taps.shape
    cout = w.shape[-1]
    nt = m_pad // tm
    cost = pl.CostEstimate(
        flops=2 * m_pad * k_pad * cout,
        transcendentals=0,
        bytes_accessed=(taps.size * 2 + w.size * 2 + b.size * 4
                        + m_pad * cout * 4 + nt * 2 * cout * 4))
    return pl.pallas_call(
        functools.partial(conv_bias_stats_kernel, m_true, tm),
        out_shape=(jax.ShapeDtypeStruct((m_pad, cout), jnp.float32),
                   jax.ShapeDtypeStruct((nt, 2, cout), jnp.float32)),
        grid=(nt,),
        in_specs=[pl.BlockSpec((tm, k_pad), lambda i: (i, 0)),
                  pl.BlockSpec((k_pad, cout), lambda i: (0, 0)),
                  pl.BlockSpec((1, cout), lambda i: (0, 0))],
        out_specs=(pl.BlockSpec((tm, cout), lambda i: (i, 0)),
                   pl.BlockSpec((1, 2, cout), lambda i: (i, 0, 0))),
        compiler_params=_PARALLEL,
        cost_estimate=cost,
    )(taps, w, b)


def _bn_relu(acc, stats, gb, m_true, tm, out_dtype):
    m_pad, cout = acc.shape
    nt = m_pad // tm
    return pl.pallas_call(
        functools.partial(bn_relu_kernel, float(m_true)),
        out_shape=jax.ShapeDtypeStruct((m_pad, cout), out_dtype),
        grid=(nt,),
        in_specs=[pl.BlockSpec((tm, cout), lambda i: (i, 0)),
                  pl.BlockSpec((nt, 2, cout), lambda i: (0, 0, 0)),
                  pl.BlockSpec((2, cout), lambda i: (0, 0))],
        out_specs=pl.BlockSpec((tm, cout), lambda i: (i, 0)),
        compiler_params=_PARALLEL,
    )(acc, stats, gb)


def _bn_add_relu(acc, stats, gb, sc, m_true, tm, w3=None, b3=None):
    m_pad, cout = acc.shape
    nt = m_pad // tm
    use_c3 = w3 is not None
    in_specs = [pl.BlockSpec((tm, cout), lambda i: (i, 0)),
                pl.BlockSpec((nt, 2, cout), lambda i: (0, 0, 0)),
                pl.BlockSpec((2, cout), lambda i: (0, 0)),
                pl.BlockSpec((tm, sc.shape[-1]), lambda i: (i, 0))]
    ins = [acc, stats, gb, sc]
    if use_c3:
        in_specs += [pl.BlockSpec(w3.shape, lambda i: (0, 0)),
                     pl.BlockSpec(b3.shape, lambda i: (0, 0))]
        ins += [w3, b3]
    return pl.pallas_call(
        functools.partial(bn_add_relu_kernel, float(m_true), use_c3),
        out_shape=jax.ShapeDtypeStruct((m_pad, cout), jnp.float32),
        grid=(nt,),
        in_specs=in_specs,
        out_specs=pl.BlockSpec((tm, cout), lambda i: (i, 0)),
        compiler_params=_PARALLEL,
    )(*ins)


# ----------------------------- wrapper ---------------------------------------


def _im2col_3x3(x, stride, dtype):
    """x: (N, H, W, C) -> (M, 9*C): the 9 taps folded into the contraction
    (lane-minor) axis so one conv == one matmul.  pad=1, kernel=3."""
    n, h, w, c = x.shape
    ho = (h - 1) // stride + 1
    wo = (w - 1) // stride + 1
    xp = jnp.pad(x.astype(dtype), ((0, 0), (1, 1), (1, 1), (0, 0)))
    cols = []
    for dy in range(3):
        for dx in range(3):
            sl = xp[:, dy:dy + stride * (ho - 1) + 1:stride,
                    dx:dx + stride * (wo - 1) + 1:stride, :]
            cols.append(sl.reshape(n * ho * wo, c))
    # TODO(synk): do this tap slicing in-kernel from a haloed VMEM tile instead
    # of materializing ~9x the activation bytes in HBM.
    return jnp.concatenate(cols, axis=1), (n, ho, wo)


def _pad2d(a, rows, cols):
    return jnp.pad(a, ((0, rows - a.shape[0]), (0, cols - a.shape[1])))


def _pick_tm(m, k_pad, cout, budget_bytes=12 * 1024 * 1024):
    """Largest power-of-two row tile (<=1024) whose double-buffered working set
    fits a conservative VMEM budget (safe for v7x's 64 MiB / 32 MiB scoped)."""
    tm = 1024
    while tm > 128:
        need = 2 * tm * (k_pad * 2 + cout * 4) + 2 * k_pad * cout * 2
        if need <= budget_bytes:
            break
        tm //= 2
    return min(tm, _round_up(m, 16))


def residual_pallas(x_nchw, params, *, stride=1, use_1x1conv=False, tile_m=None):
    x = jnp.transpose(x_nchw, (0, 2, 3, 1)).astype(jnp.float32)   # NHWC
    n, h, w, cin = x.shape
    cout = params["w1"].shape[-1]

    # ---- conv1 (single folded-tap bf16 matmul, tiled over M) ----
    taps1, (_, ho, wo) = _im2col_3x3(x, stride, jnp.bfloat16)
    m = n * ho * wo
    k1, k2 = 9 * cin, 9 * cout
    k1p, k2p = _round_up(k1, 8), _round_up(k2, 8)
    tm = tile_m if tile_m is not None else _pick_tm(m, max(k1p, k2p), cout)
    m_pad = _round_up(m, tm)

    w1 = _pad2d(params["w1"].reshape(k1, cout).astype(jnp.bfloat16), k1p, cout)
    acc1, stats1 = _conv_bias_stats(_pad2d(taps1, m_pad, k1p), w1,
                                    params["b1"], m, tm)

    # ---- bn1 + relu (two-pass BN; partial sums reduced in-kernel) ----
    gb1 = jnp.concatenate([params["g1"], params["be1"]], axis=0)
    y1 = _bn_relu(acc1, stats1, gb1, m, tm, jnp.bfloat16)

    # ---- conv2 ----
    # TODO(synk): fuse conv2 with bn1/relu via spatially-haloed tiles to avoid
    # the y1 HBM round trip.
    taps2, _ = _im2col_3x3(y1[:m].reshape(n, ho, wo, cout), 1, jnp.bfloat16)
    w2 = _pad2d(params["w2"].reshape(k2, cout).astype(jnp.bfloat16), k2p, cout)
    acc2, stats2 = _conv_bias_stats(_pad2d(taps2, m_pad, k2p), w2,
                                    params["b2"], m, tm)

    # ---- bn2 + shortcut + relu ----
    gb2 = jnp.concatenate([params["g2"], params["be2"]], axis=0)
    if use_1x1conv:
        cinp = _round_up(cin, 8)
        sc = x[:, ::stride, ::stride, :].reshape(m, cin).astype(jnp.bfloat16)
        sc = _pad2d(sc, m_pad, cinp)
        w3 = _pad2d(params["w3"].astype(jnp.bfloat16), cinp, cout)
        out = _bn_add_relu(acc2, stats2, gb2, sc, m, tm, w3, params["b3"])
    else:
        assert cin == cout and stride == 1, \
            "identity shortcut requires cin == cout and stride == 1"
        sc = _pad2d(x.reshape(m, cout), m_pad, cout)     # keep identity path f32
        out = _bn_add_relu(acc2, stats2, gb2, sc, m, tm)

    out = out[:m].reshape(n, ho, wo, cout)
    return jnp.transpose(out, (0, 3, 1, 2))


# ----------------------------- reference & params ----------------------------


def residual_ref(x_nchw, params, *, stride=1, use_1x1conv=False):
    x = jnp.transpose(x_nchw, (0, 2, 3, 1)).astype(jnp.float32)

    def conv(inp, w, b, s, pad):
        y = jax.lax.conv_general_dilated(
            inp, w, (s, s), [(pad, pad), (pad, pad)],
            dimension_numbers=("NHWC", "HWIO", "NHWC"))
        return y + b.reshape(1, 1, 1, -1)

    def bn(y, g, be):
        mean = jnp.mean(y, axis=(0, 1, 2), keepdims=True)
        var = jnp.mean(jnp.square(y - mean), axis=(0, 1, 2), keepdims=True)
        return ((y - mean) * jax.lax.rsqrt(var + 1e-5) * g.reshape(1, 1, 1, -1)
                + be.reshape(1, 1, 1, -1))

    y = jax.nn.relu(bn(conv(x, params["w1"], params["b1"], stride, 1),
                       params["g1"], params["be1"]))
    y = bn(conv(y, params["w2"], params["b2"], 1, 1), params["g2"], params["be2"])
    if use_1x1conv:
        w3 = params["w3"].reshape(1, 1, params["w3"].shape[0], params["w3"].shape[1])
        sc = conv(x, w3, params["b3"], stride, 0)
    else:
        sc = x
    out = jax.nn.relu(y + sc)
    return jnp.transpose(out, (0, 3, 1, 2))


def init_params(key, cin, cout, use_1x1conv):
    keys = jax.random.split(key, 6)
    s1 = 1.0 / math.sqrt(cin * 9)
    s2 = 1.0 / math.sqrt(cout * 9)
    p = {
        "w1": jax.random.uniform(keys[0], (3, 3, cin, cout), jnp.float32, -s1, s1),
        "b1": jax.random.uniform(keys[1], (1, cout), jnp.float32, -s1, s1),
        "w2": jax.random.uniform(keys[2], (3, 3, cout, cout), jnp.float32, -s2, s2),
        "b2": jax.random.uniform(keys[3], (1, cout), jnp.float32, -s2, s2),
        "g1": jnp.ones((1, cout), jnp.float32),
        "be1": jnp.zeros((1, cout), jnp.float32),
        "g2": jnp.ones((1, cout), jnp.float32),
        "be2": jnp.zeros((1, cout), jnp.float32),
    }
    if use_1x1conv:
        s3 = 1.0 / math.sqrt(cin)
        p["w3"] = jax.random.uniform(keys[4], (cin, cout), jnp.float32, -s3, s3)
        p["b3"] = jax.random.uniform(keys[5], (1, cout), jnp.float32, -s3, s3)
    return p


# ----------------------------- main -------------------------------------------


if __name__ == "__main__":
    key = jax.random.PRNGKey(0)
    kx, kp1, kp2 = jax.random.split(key, 3)
    x = jax.random.normal(kx, (2, 4, 16, 16), jnp.float32)  # NCHW, like PyTorch

    # Tolerances are loosened vs a pure-f32 reference because matmul operands
    # are bf16 (accumulation and BN are f32); a mean-abs-error check keeps the
    # test meaningful.

    # Case 1: Residual(4, 4) — identity shortcut, stride 1.  tile_m=96 forces a
    # multi-tile grid (nt=6) with row padding + stat masking to exercise the
    # tiled two-pass BN path.
    p1 = init_params(kp1, 4, 4, False)
    out1 = residual_pallas(x, p1, stride=1, use_1x1conv=False, tile_m=96)
    jax.block_until_ready(out1)
    ref1 = residual_ref(x, p1, stride=1, use_1x1conv=False)
    assert out1.shape == (2, 4, 16, 16), out1.shape
    assert jnp.allclose(out1, ref1, atol=1e-1, rtol=1e-1)
    assert float(jnp.mean(jnp.abs(out1 - ref1))) < 3e-2

    # Case 2: Residual(4, 8, use_1x1conv=True, stride=2) — auto tile size.
    p2 = init_params(kp2, 4, 8, True)
    out2 = residual_pallas(x, p2, stride=2, use_1x1conv=True)
    jax.block_until_ready(out2)
    ref2 = residual_ref(x, p2, stride=2, use_1x1conv=True)
    assert out2.shape == (2, 8, 8, 8), out2.shape
    assert jnp.allclose(out2, ref2, atol=1e-1, rtol=1e-1)
    assert float(jnp.mean(jnp.abs(out2 - ref2))) < 3e-2

    print("KERNEL_OK")
</pallas_src>

<mosaic_0001>
module attributes {stable_mosaic.version = 11 : i64} {
  func.func @conv_bias_stats_kernel(%arg0: i32, %arg1: memref<96x40xbf16, #tpu.memory_space<vmem>>, %arg2: memref<40x4xbf16, #tpu.memory_space<vmem>>, %arg3: memref<1x4xf32, #tpu.memory_space<vmem>>, %arg4: memref<96x4xf32, #tpu.memory_space<vmem>>, %arg5: memref<1x2x4xf32, #tpu.memory_space<vmem>>) attributes {dimension_semantics = [#tpu.dimension_semantics<parallel>], iteration_bounds = array<i64: 6>, scalar_prefetch = 0 : i64, scratch_operands = 0 : i64, tpu.core_type = #tpu.core_type<tc>, window_params = [{transform_indices = @transform_0, window_bounds = array<i64: 96, 40>}, {pipeline_mode = #tpu.pipeline_mode<synchronous>, transform_indices = @transform_1, window_bounds = array<i64: 40, 4>}, {pipeline_mode = #tpu.pipeline_mode<synchronous>, transform_indices = @transform_2, window_bounds = array<i64: 1, 4>}, {transform_indices = @transform_3, window_bounds = array<i64: 96, 4>}, {transform_indices = @transform_4, window_bounds = array<i64: 1, 2, 4>}]} {
    %c0 = arith.constant 0 : index
    %c0_0 = arith.constant 0 : index
    %0 = vector.load %arg1[%c0, %c0_0] : memref<96x40xbf16, #tpu.memory_space<vmem>>, vector<96x40xbf16>
    %c0_1 = arith.constant 0 : index
    %c0_2 = arith.constant 0 : index
    %1 = vector.load %arg2[%c0_1, %c0_2] : memref<40x4xbf16, #tpu.memory_space<vmem>>, vector<40x4xbf16>
    %cst = arith.constant dense<0.000000e+00> : vector<96x4xf32>
    %2 = tpu.matmul %0, %1, %cst {dimension_numbers = #tpu.dot_dimension_numbers<[1], [0], [0], [1], [0, 0, 1, 1], [], []>} : vector<96x40xbf16>, vector<40x4xbf16>, vector<96x4xf32> -> vector<96x4xf32>
    %c0_3 = arith.constant 0 : index
    %c0_4 = arith.constant 0 : index
    %3 = vector.load %arg3[%c0_3, %c0_4] : memref<1x4xf32, #tpu.memory_space<vmem>>, vector<1x4xf32>
    %4 = vector.broadcast %3 : vector<1x4xf32> to vector<96x4xf32>
    %5 = arith.addf %2, %4 : vector<96x4xf32>
    %c96_i32 = arith.constant 96 : i32
    %6 = arith.muli %arg0, %c96_i32 : i32
    %7 = tpu.iota {dimensions = array<i32: 0>} : vector<96x1xi32>
    %8 = vector.broadcast %6 : i32 to vector<96x1xi32>
    %9 = arith.addi %8, %7 : vector<96x1xi32>
    %c512_i32 = arith.constant 512 : i32
    %10 = vector.broadcast %c512_i32 : i32 to vector<96x1xi32>
    %11 = arith.cmpi slt, %9, %10 : vector<96x1xi32>
    %cst_5 = arith.constant 0.000000e+00 : f32
    %12 = vector.shape_cast %11 : vector<96x1xi1> to vector<96x1xi1>
    %13 = vector.broadcast %12 : vector<96x1xi1> to vector<96x4xi1>
    %14 = vector.broadcast %cst_5 : f32 to vector<96x4xf32>
    %15 = arith.select %13, %5, %14 : vector<96x4xi1>, vector<96x4xf32>
    %c0_6 = arith.constant 0 : index
    %c0_7 = arith.constant 0 : index
    %16 = vector.load %arg4[%c0_6, %c0_7] : memref<96x4xf32, #tpu.memory_space<vmem>>, vector<96x4xf32>
    tpu.vector_store %arg4[%c0_6, %c0_7], %15 {strides = array<i32>} : memref<96x4xf32, #tpu.memory_space<vmem>>, vector<96x4xf32>,
    %cst_8 = arith.constant dense<0.000000e+00> : vector<4xf32>
    %17 = vector.multi_reduction <add>, %15, %cst_8 [0] : vector<96x4xf32> to vector<4xf32>
    %18 = vector.shape_cast %17 : vector<4xf32> to vector<1x4xf32>
    %19 = arith.mulf %15, %15 : vector<96x4xf32>
    %cst_9 = arith.constant dense<0.000000e+00> : vector<4xf32>
    %20 = vector.multi_reduction <add>, %19, %cst_9 [0] : vector<96x4xf32> to vector<4xf32>
    %21 = vector.shape_cast %20 : vector<4xf32> to vector<1x4xf32>
    %22 = tpu.concatenate %18, %21 in 0 : vector<1x4xf32>, vector<1x4xf32> -> vector<2x4xf32>
    %23 = vector.shape_cast %22 : vector<2x4xf32> to vector<1x2x4xf32>
    %c0_10 = arith.constant 0 : index
    %c0_11 = arith.constant 0 : index
    %c0_12 = arith.constant 0 : index
    %24 = vector.load %arg5[%c0_10, %c0_11, %c0_12] : memref<1x2x4xf32, #tpu.memory_space<vmem>>, vector<1x2x4xf32>
    tpu.vector_store %arg5[%c0_10, %c0_11, %c0_12], %23 {strides = array<i32>} : memref<1x2x4xf32, #tpu.memory_space<vmem>>, vector<1x2x4xf32>,
    return
  }
  func.func @transform_0(%arg0: i32) -> (i32, i32) {
    %c0_i32 = arith.constant 0 : i32
    %c0_i32_0 = arith.constant 0 : i32
    return %arg0, %c0_i32 : i32, i32
  }
  func.func @transform_1(%arg0: i32) -> (i32, i32) {
    %c0_i32 = arith.constant 0 : i32
    %c0_i32_0 = arith.constant 0 : i32
    %c0_i32_1 = arith.constant 0 : i32
    return %c0_i32, %c0_i32_0 : i32, i32
  }
  func.func @transform_2(%arg0: i32) -> (i32, i32) {
    %c0_i32 = arith.constant 0 : i32
    %c0_i32_0 = arith.constant 0 : i32
    %c0_i32_1 = arith.constant 0 : i32
    return %c0_i32, %c0_i32_0 : i32, i32
  }
  func.func @transform_3(%arg0: i32) -> (i32, i32) {
    %c0_i32 = arith.constant 0 : i32
    %c0_i32_0 = arith.constant 0 : i32
    return %arg0, %c0_i32 : i32, i32
  }
  func.func @transform_4(%arg0: i32) -> (i32, i32, i32) {
    %c0_i32 = arith.constant 0 : i32
    %c0_i32_0 = arith.constant 0 : i32
    %c0_i32_1 = arith.constant 0 : i32
    return %arg0, %c0_i32, %c0_i32_0 : i32, i32, i32
  }
}

</mosaic_0001>

<llo_original>
// kernel: tpu_custom_call.1
$region0: #{tpu_custom_call.1}
  #allocation0 [shape = 'u32[]', space=smem, size = 0x4, offset = 0x4, fixed_abs, tag = 'smem constant byte address 0x4 - core index']
  #allocation1 [shape = 'u32[144,128]{1,0:T(1,128)}', space=vmem, size = 0x12000, scoped, tag = 'internal scratch']
  %s0 = inlined_call_operand.vmem [shape: bf16[576,40], index: 0, kind: input, shape index: {}]
  %s1 = inlined_call_operand.vmem [shape: bf16[40,4], index: 1, kind: input, shape index: {}]
  %s2 = inlined_call_operand.vmem [shape: f32[1,4], index: 2, kind: input, shape index: {}]
  %s3 = inlined_call_operand.vmem [shape: f32[576,4], index: 3, kind: output, shape index: {0}]
  %s4 = inlined_call_operand.vmem [shape: f32[6,2,4], index: 4, kind: output, shape index: {1}]
  %5 = xla_tuple %s3, %s4
  %s6 = sld [smem:[#allocation0]]
  $region53: #{tpu_custom_call.1} parent=0
    _
  %s8 = ssub.s32 1, %s6
  %s9 = scalar_select 0, %s8, %s6
  loop: start=0, step=1, limit=8
  $region2: #{tpu_custom_call.1} parent=0 // loop_pre_header
    _
  $region3: #{tpu_custom_call.1} parent=0 // loop_header
    %s11 = sphi 0, %s15
    %p12 = scmp.ge.s32.totalorder %s11, 8
    %s21 = sphi 0, %s23
    %s24 = sphi 0, %s21
    %s25 = sphi 0, %s24
    %s41 = sphi 0, %s25
    %s45 = sphi 0, %s45
    %s47 = sphi 0, %s45
    %s48 = sphi 0, %s47
    %s62 = sphi 0, %s48
    %s66 = sphi 0, %s66
    %s68 = sphi 0, %s66
    %s69 = sphi 0, %s68
    %s83 = sphi 0, %s69
    %s89 = sphi 0, %s91
    %s92 = sphi 0, %s89
    %s93 = sphi 0, %s92
    %s109 = sphi 0, %s93
    %s115 = sphi 0, %s117
    %s118 = sphi 0, %s115
    %s119 = sphi 0, %s118
    %s135 = sphi 0, %s119
  $region4: #{tpu_custom_call.1} parent=0 // loop_header_branch
    %14 = sbr.rel (%p12) target = $region8
  $region5: #{tpu_custom_call.1} parent=0 // loop_body
    %s16 = ssub.s32 %s11, 1
    %s17 = ssub.s32 %s11, 2
    %s18 = sadd.s32 %s11, 1
    %s19 = ssub.s32 %s11, %s18
    %p20 = scmp.eq.s32.totalorder %s19, 0
    %s22 = sadd.s32 %s21, 1
    %s23 = scalar_select %p20, %s21, %s22
    %p26 = pneg %p20
    %p27 = scmp.eq.s32.totalorder %s11, 5
    %p28 = por %p26, %p27
    %p29 = scmp.ne.s32.totalorder %s21, %s24
    %p30 = scmp.eq.s32.totalorder %s11, 0
    %p31 = por %p29, %p30
    %p32 = scmp.ne.s32.totalorder %s21, %s24
    %p33 = scmp.eq.s32.totalorder %s16, 5
    %p34 = por %p32, %p33
    %p35 = scmp.ne.s32.totalorder %s24, %s25
    %p36 = scmp.eq.s32.totalorder %s16, 0
    %p37 = por %p35, %p36
    %p38 = scmp.ne.s32.totalorder %s24, %s25
    %p39 = scmp.eq.s32.totalorder %s17, 5
    %p40 = por %p38, %p39
    %p42 = scmp.ne.s32.totalorder %s25, %s41
    %p43 = scmp.eq.s32.totalorder %s17, 0
    %p44 = por %p42, %p43
    %s46 = sadd.s32 %s45, 1
    %p49 = scmp.eq.s32.totalorder %s11, 5
    %p50 = scmp.ne.s32.totalorder %s45, %s47
    %p51 = scmp.eq.s32.totalorder %s11, 0
    %p52 = por %p50, %p51
    %p53 = scmp.ne.s32.totalorder %s45, %s47
    %p54 = scmp.eq.s32.totalorder %s16, 5
    %p55 = por %p53, %p54
    %p56 = scmp.ne.s32.totalorder %s47, %s48
    %p57 = scmp.eq.s32.totalorder %s16, 0
    %p58 = por %p56, %p57
    %p59 = scmp.ne.s32.totalorder %s47, %s48
    %p60 = scmp.eq.s32.totalorder %s17, 5
    %p61 = por %p59, %p60
    %p63 = scmp.ne.s32.totalorder %s48, %s62
    %p64 = scmp.eq.s32.totalorder %s17, 0
    %p65 = por %p63, %p64
    %s67 = sadd.s32 %s66, 1
    %p70 = scmp.eq.s32.totalorder %s11, 5
    %p71 = scmp.ne.s32.totalorder %s66, %s68
    %p72 = scmp.eq.s32.totalorder %s11, 0
    %p73 = por %p71, %p72
    %p74 = scmp.ne.s32.totalorder %s66, %s68
    %p75 = scmp.eq.s32.totalorder %s16, 5
    %p76 = por %p74, %p75
    %p77 = scmp.ne.s32.totalorder %s68, %s69
    %p78 = scmp.eq.s32.totalorder %s16, 0
    %p79 = por %p77, %p78
    %p80 = scmp.ne.s32.totalorder %s68, %s69
    %p81 = scmp.eq.s32.totalorder %s17, 5
    %p82 = por %p80, %p81
    %p84 = scmp.ne.s32.totalorder %s69, %s83
    %p85 = scmp.eq.s32.totalorder %s17, 0
    %p86 = por %p84, %p85
    %s87 = ssub.s32 %s11, %s18
    %p88 = scmp.eq.s32.totalorder %s87, 0
    %s90 = sadd.s32 %s89, 1
    %s91 = scalar_select %p88, %s89, %s90
    %p94 = pneg %p88
    %p95 = scmp.eq.s32.totalorder %s11, 5
    %p96 = por %p94, %p95
    %p97 = scmp.ne.s32.totalorder %s89, %s92
    %p98 = scmp.eq.s32.totalorder %s11, 0
    %p99 = por %p97, %p98
    %p100 = scmp.ne.s32.totalorder %s89, %s92
    %p101 = scmp.eq.s32.totalorder %s16, 5
    %p102 = por %p100, %p101
    %p103 = scmp.ne.s32.totalorder %s92, %s93
    %p104 = scmp.eq.s32.totalorder %s16, 0
    %p105 = por %p103, %p104
    %p106 = scmp.ne.s32.totalorder %s92, %s93
    %p107 = scmp.eq.s32.totalorder %s17, 5
    %p108 = por %p106, %p107
    %p110 = scmp.ne.s32.totalorder %s93, %s109
    %p111 = scmp.eq.s32.totalorder %s17, 0
    %p112 = por %p110, %p111
    %s113 = ssub.s32 %s11, %s18
    %p114 = scmp.eq.s32.totalorder %s113, 0
    %s116 = sadd.s32 %s115, 1
    %s117 = scalar_select %p114, %s115, %s116
    %p120 = pneg %p114
    %p121 = scmp.eq.s32.totalorder %s11, 5
    %p122 = por %p120, %p121
    %p123 = scmp.ne.s32.totalorder %s115, %s118
    %p124 = scmp.eq.s32.totalorder %s11, 0
    %p125 = por %p123, %p124
    %p126 = scmp.ne.s32.totalorder %s115, %s118
    %p127 = scmp.eq.s32.totalorder %s16, 5
    %p128 = por %p126, %p127
    %p129 = scmp.ne.s32.totalorder %s118, %s119
    %p130 = scmp.eq.s32.totalorder %s16, 0
    %p131 = por %p129, %p130
    %p132 = scmp.ne.s32.totalorder %s118, %s119
    %p133 = scmp.eq.s32.totalorder %s17, 5
    %p134 = por %p132, %p133
    %p136 = scmp.ne.s32.totalorder %s119, %s135
    %p137 = scmp.eq.s32.totalorder %s17, 0
    %p138 = por %p136, %p137
    %p139 = scmp.le.s32.totalorder 1, %s11
    %p140 = scmp.lt.s32.totalorder %s11, 7
    %p141 = pnand %p139, %p140
    %p142 = pneg %p141
    // Predicated region
    $region9: #{tpu_custom_call.1} parent=5 // pred_check
      _
    $region10: #{tpu_custom_call.1} parent=5 // pred_check_branch
      %144 = sbr.rel (%p141) target = $region12
    $region11: #{tpu_custom_call.1} parent=5 // pred_region
      %s145 = ssub.s32 %s11, 1
      // Predicated region
      $region13: #{tpu_custom_call.1} parent=11 // pred_check
        %p146 = pneg %p58
      $region14: #{tpu_custom_call.1} parent=11 // pred_check_branch
        %148 = sbr.rel (%p146) target = $region16
      $region15: #{tpu_custom_call.1} parent=11 // pred_region
        _
      $region16: #{tpu_custom_call.1} parent=11 // pred_fallthru
        _
      // Predicated region
      $region17: #{tpu_custom_call.1} parent=11 // pred_check
        %p149 = pneg %p79
      $region18: #{tpu_custom_call.1} parent=11 // pred_check_branch
        %151 = sbr.rel (%p149) target = $region20
      $region19: #{tpu_custom_call.1} parent=11 // pred_region
        _
      $region20: #{tpu_custom_call.1} parent=11 // pred_fallthru
        _
    $region12: #{tpu_custom_call.1} parent=5 // pred_fallthru
      _
    %p152 = scmp.lt.s32.totalorder %s11, 6
    // Predicated region
    $region21: #{tpu_custom_call.1} parent=5 // pred_check
      %p153 = pneg %p152
    $region22: #{tpu_custom_call.1} parent=5 // pred_check_branch
      %155 = sbr.rel (%p153) target = $region24
    $region23: #{tpu_custom_call.1} parent=5 // pred_region
      // Predicated region
      $region25: #{tpu_custom_call.1} parent=23 // pred_check
        %p156 = pneg %p31
      $region26: #{tpu_custom_call.1} parent=23 // pred_check_branch
        %158 = sbr.rel (%p156) target = $region28
      $region27: #{tpu_custom_call.1} parent=23 // pred_region
        %s159 = smul.u32 12, %s11
        %p160 = scmp.lt.s32.totalorder %s159, 71
        %s161 = scalar_select %p160, %s159, 71
        %s162 = smul.addr %s161, 4
        %s163 = scalar_lea.vmem %s0, %s162
        %s164 = smul.u32 12, %s11
      $region28: #{tpu_custom_call.1} parent=23 // pred_fallthru
        _
    $region24: #{tpu_custom_call.1} parent=5 // pred_fallthru
      _
    %p165 = scmp.le.s32.totalorder 1, %s11
    %p166 = scmp.lt.s32.totalorder %s11, 7
    %p167 = pnand %p165, %p166
    %p168 = pneg %p167
    // Predicated region
    $region29: #{tpu_custom_call.1} parent=5 // pred_check
      _
    $region30: #{tpu_custom_call.1} parent=5 // pred_check_branch
      %170 = sbr.rel (%p167) target = $region32
    $region31: #{tpu_custom_call.1} parent=5 // pred_region
      %s171 = ssub.s32 %s11, 1
      %s172 = smul.u32 12, %s16
      %p173 = scmp.lt.s32.totalorder %s172, 71
      %s174 = scalar_select %p173, %s172, 71
      %s175 = smul.addr %s174, 4
      %s176 = scalar_lea.vmem %s0, %s175
      %p177 = pneg %p37
      %p178 = pneg %p34
      %p179 = pneg %p58
      %p180 = pneg %p55
      %p181 = pneg %p79
      %p182 = pneg %p76
      %p183 = pneg %p105
      %p184 = pneg %p102
      %s185 = smul.u32 12, %s16
      %p186 = scmp.lt.s32.totalorder %s185, 71
      %s187 = scalar_select %p186, %s185, 71
      %s188 = smul.addr %s187, 8
      %s189 = scalar_lea.vmem %s3, %s188
      %p190 = pneg %p131
      %p191 = pneg %p128
      %p192 = scmp.lt.s32.totalorder %s16, 5
      %s193 = scalar_select %p192, %s16, 5
      %s194 = smul.addr %s193, 2
      %s195 = scalar_lea.vmem %s4, %s194
      %s196 = smul.u32 12, %s16
      %p197 = scmp.lt.s32.totalorder %s196, 71
      %s198 = scalar_select %p197, %s196, 71
      %s199 = smul.addr %s198, 4
      %s200 = scalar_lea.vmem %s0, %s199
      %s201 = smul.u32 12, %s16
      %s202 = smul.u32 12, %s16
      %p203 = scmp.lt.s32.totalorder %s202, 71
      %s204 = scalar_select %p203, %s202, 71
      %s205 = smul.addr %s204, 8
      %s206 = scalar_lea.vmem %s3, %s205
      %s207 = smul.u32 12, %s16
      %p208 = scmp.lt.s32.totalorder %s16, 5
      %s209 = scalar_select %p208, %s16, 5
      %s210 = smul.addr %s209, 2
      %s211 = scalar_lea.vmem %s4, %s210
      %v213 = vld [vmem:[%s200] sm:$0xf]
      %v214 = vld [vmem:[%s200 + $0x4] sm:$0xf]
      %v215 = vld [vmem:[%s200 + $0x8] sm:$0xf]
      %v216 = vld [vmem:[%s200 + $0xc] sm:$0xf]
      %v217 = vld [vmem:[%s200 + $0x10] sm:$0xf]
      %v218 = vld [vmem:[%s200 + $0x14] sm:$0xf]
      %v219 = vld [vmem:[%s200 + $0x18] sm:$0xf]
      %v220 = vld [vmem:[%s200 + $0x1c] sm:$0xf]
      %v221 = vld [vmem:[%s200 + $0x20] sm:$0xf]
      %v222 = vld [vmem:[%s200 + $0x24] sm:$0xf]
      %v223 = vld [vmem:[%s200 + $0x28] sm:$0xf]
      %v224 = vld [vmem:[%s200 + $0x2c] sm:$0xf]
      %v225 = vld [vmem:[%s1] sm:$0xf]
      %v226 = vld [vmem:[%s1 + $0x4] sm:$0xf]
      %v227 = vld [vmem:[%s1 + $0x8] sm:$0xf]
      %v228 = vld [vmem:[%s1 + $0xc] sm:$0xf]
      %v229 = vld [vmem:[%s1 + $0x10] sm:$0xf]
      %v230 = vld [vmem:[%s2] sm:$0x1]
      %v232 = vlaneseq
      %v233 = vshrl.u32 %v232, 7
      %v234 = vsub.s32 0, %v233
      %v235 = vrot.slane %v230, %v234
      %v249 = vunpack.c.l.b16 %v213
      %v250 = vunpack.c.l.b16 %v214
      %v251 = vunpack.c.l.b16 %v215
      %v252 = vunpack.c.l.b16 %v216
      %v253 = vunpack.c.l.b16 %v217
      %v254 = vunpack.c.l.b16 %v218
      %v255 = vunpack.c.l.b16 %v219
      %v256 = vunpack.c.l.b16 %v220
      %v257 = vunpack.c.l.b16 %v221
      %v258 = vunpack.c.l.b16 %v222
      %v259 = vunpack.c.l.b16 %v223
      %v260 = vunpack.c.l.b16 %v224
      %v261 = vpack.c.b16 %v250, %v249
      %v262 = vpack.c.b16 %v252, %v251
      %v263 = vpack.c.b16 %v254, %v253
      %v264 = vpack.c.b16 %v256, %v255
      %v265 = vpack.c.b16 %v258, %v257
      %v266 = vpack.c.b16 %v260, %v259
      %v272 = vunpack.c.l.b16 %v225
      %v273 = vunpack.c.l.b16 %v226
      %v274 = vunpack.c.l.b16 %v227
      %v275 = vunpack.c.l.b16 %v228
      %v276 = vunpack.c.l.b16 %v229
      %v277 = vpack.c.b16 %v273, %v272
      %v278 = vpack.c.b16 %v275, %v274
      %v279 = vpack.c.b16 %v276, %v276
      %vm282 = vcmask 326656
      %v284 = vsel %vm282, %v261, 0
      %v287 = vsel %vm282, %v262, 0
      %v290 = vsel %vm282, %v263, 0
      %v293 = vsel %vm282, %v264, 0
      %v296 = vsel %vm282, %v265, 0
      %v299 = vsel %vm282, %v266, 0
      %vm301 = vcmask 1043456
      %v303 = vsel %vm301, %v279, 0
      %305 = vmatprep.subr.bf16.mxu0 0
      %306 = vmatpush1.bf16.msra.mxu0 0
      %307 = vmatprep.subr.bf16.mxu0 0
      %308 = vmatpush1.bf16.msra.mxu0 0
      %309 = vmatprep.subr.bf16.mxu0 0
      %310 = vmatpush1.bf16.msra.mxu0 0
      %311 = vmatprep.subr.bf16.mxu0 0
      %312 = vmatpush1.bf16.msra.mxu0 0
      %313 = vmatprep.subr.bf16.mxu0 0
      %314 = vmatpush1.bf16.msra.mxu0 0
      %315 = vmatprep.subr.bf16.mxu0 0
      %316 = vmatpush1.bf16.msra.mxu0 %v303
      %317 = vmatprep.subr.bf16.mxu0 0
      %318 = vmatpush1.bf16.msra.mxu0 %v278
      %319 = vmatprep.subr.bf16.mxu0 0
      %320 = vmatpush1.bf16.msra.mxu0 %v277
      %321 = vmatprep.subr.bf16.mxu0 0
      %322 = vmatpush2.bf16.msra.mxu0 0
      %323 = vmatprep.subr.bf16.mxu0 0
      %324 = vmatpush2.bf16.msra.mxu0 0
      %325 = vmatprep.subr.bf16.mxu0 0
      %326 = vmatpush2.bf16.msra.mxu0 0
      %327 = vmatprep.subr.bf16.mxu0 0
      %328 = vmatpush2.bf16.msra.mxu0 0
      %329 = vmatprep.subr.bf16.mxu0 0
      %330 = vmatpush2.bf16.msra.mxu0 0
      %331 = vmatprep.subr.bf16.mxu0 0
      %332 = vmatpush2.bf16.msra.mxu0 0
      %333 = vmatprep.subr.bf16.mxu0 0
      %334 = vmatpush2.bf16.msra.mxu0 0
      %335 = vmatprep.subr.bf16.mxu0 0
      %336 = vmatpush2.bf16.msra.mxu0 0
      %337 = vmatprep.mubr.bf16.mxu0 0
      %338 = vmatmul.mubr.bf16.gmra.mxu0 %v284
      %v339 = vpop.f32.mrf.mxu0
      %v340 = vadd.f32 %v235, %v339
      %v341 = vpop.f32.mrf.mxu0
      %v342 = vpop.f32.mrf.mxu0
      %v343 = vadd.f32 %v235, %v342
      %v344 = vpop.f32.mrf.mxu0
      %345 = vmatprep.mubr.bf16.mxu0 0
      %346 = vmatmul.mubr.bf16.gmra.mxu0 %v287
      %v347 = vpop.f32.mrf.mxu0
      %v348 = vadd.f32 %v235, %v347
      %v349 = vpop.f32.mrf.mxu0
      %v350 = vpop.f32.mrf.mxu0
      %v351 = vadd.f32 %v235, %v350
      %v352 = vpop.f32.mrf.mxu0
      %353 = vmatprep.mubr.bf16.mxu0 0
      %354 = vmatmul.mubr.bf16.gmra.mxu0 %v290
      %v355 = vpop.f32.mrf.mxu0
      %v356 = vadd.f32 %v235, %v355
      %v357 = vpop.f32.mrf.mxu0
      %v358 = vpop.f32.mrf.mxu0
      %v359 = vadd.f32 %v235, %v358
      %v360 = vpop.f32.mrf.mxu0
      %361 = vmatprep.mubr.bf16.mxu0 0
      %362 = vmatmul.mubr.bf16.gmra.mxu0 %v293
      %v363 = vpop.f32.mrf.mxu0
      %v364 = vadd.f32 %v235, %v363
      %v365 = vpop.f32.mrf.mxu0
      %v366 = vpop.f32.mrf.mxu0
      %v367 = vadd.f32 %v235, %v366
      %v368 = vpop.f32.mrf.mxu0
      %369 = vmatprep.mubr.bf16.mxu0 0
      %370 = vmatmul.mubr.bf16.gmra.mxu0 %v296
      %v371 = vpop.f32.mrf.mxu0
      %v372 = vadd.f32 %v235, %v371
      %v373 = vpop.f32.mrf.mxu0
      %v374 = vpop.f32.mrf.mxu0
      %v375 = vadd.f32 %v235, %v374
      %v376 = vpop.f32.mrf.mxu0
      %377 = vmatprep.mubr.bf16.mxu0 0
      %378 = vmatmul.mubr.bf16.gmra.mxu0 %v299
      %v379 = vpop.f32.mrf.mxu0
      %v380 = vadd.f32 %v235, %v379
      %v381 = vpop.f32.mrf.mxu0
      %v382 = vpop.f32.mrf.mxu0
      %v383 = vadd.f32 %v235, %v382
      %v384 = vpop.f32.mrf.mxu0
      %385 = vdwg.mxu0
      %s386 = smul.u32 %s16, 96
      %v387 = vlaneseq
      %v388 = vshrl.u32 %v387, 7
      %v389 = vadd.s32 %v388, 8
      %v390 = vadd.s32 %v388, 16
      %v391 = vadd.s32 %v388, 24
      %v392 = vadd.s32 %v388, 32
      %v393 = vadd.s32 %v388, 40
      %v394 = vadd.s32 %v388, 48
      %v395 = vadd.s32 %v388, 56
      %v396 = vadd.s32 %v388, 64
      %v397 = vadd.s32 %v388, 72
      %v398 = vadd.s32 %v388, 80
      %v399 = vadd.s32 %v388, 88
      %v400 = vstv %s386
      %v401 = vadd.s32 %v400, %v388
      %v402 = vadd.s32 %v400, %v389
      %v403 = vadd.s32 %v400, %v390
      %v404 = vadd.s32 %v400, %v391
      %v405 = vadd.s32 %v400, %v392
      %v406 = vadd.s32 %v400, %v393
      %v407 = vadd.s32 %v400, %v394
      %v408 = vadd.s32 %v400, %v395
      %v409 = vadd.s32 %v400, %v396
      %v410 = vadd.s32 %v400, %v397
      %v411 = vadd.s32 %v400, %v398
      %v412 = vadd.s32 %v400, %v399
      %vm413 = vcmp.lt.s32.totalorder %v401, 512
      %vm414 = vcmp.lt.s32.totalorder %v402, 512
      %vm415 = vcmp.lt.s32.totalorder %v403, 512
      %vm416 = vcmp.lt.s32.totalorder %v404, 512
      %vm417 = vcmp.lt.s32.totalorder %v405, 512
      %vm418 = vcmp.lt.s32.totalorder %v406, 512
      %vm419 = vcmp.lt.s32.totalorder %v407, 512
      %vm420 = vcmp.lt.s32.totalorder %v408, 512
      %vm421 = vcmp.lt.s32.totalorder %v409, 512
      %vm422 = vcmp.lt.s32.totalorder %v410, 512
      %vm423 = vcmp.lt.s32.totalorder %v411, 512
      %vm424 = vcmp.lt.s32.totalorder %v412, 512
      %v425 = vsel %vm413, 1, 0
      %v426 = vsel %vm414, 1, 0
      %v427 = vsel %vm415, 1, 0
      %v428 = vsel %vm416, 1, 0
      %v429 = vsel %vm417, 1, 0
      %v430 = vsel %vm418, 1, 0
      %v431 = vsel %vm419, 1, 0
      %v432 = vsel %vm420, 1, 0
      %v433 = vsel %vm421, 1, 0
      %v434 = vsel %vm422, 1, 0
      %v435 = vsel %vm423, 1, 0
      %v436 = vsel %vm424, 1, 0
      %vm437 = vcmp.eq.s32.totalorder %v425, 1
      %vm438 = vcmp.eq.s32.totalorder %v426, 1
      %vm439 = vcmp.eq.s32.totalorder %v427, 1
      %vm440 = vcmp.eq.s32.totalorder %v428, 1
      %vm441 = vcmp.eq.s32.totalorder %v429, 1
      %vm442 = vcmp.eq.s32.totalorder %v430, 1
      %vm443 = vcmp.eq.s32.totalorder %v431, 1
      %vm444 = vcmp.eq.s32.totalorder %v432, 1
      %vm445 = vcmp.eq.s32.totalorder %v433, 1
      %vm446 = vcmp.eq.s32.totalorder %v434, 1
      %vm447 = vcmp.eq.s32.totalorder %v435, 1
      %vm448 = vcmp.eq.s32.totalorder %v436, 1
      %v449 = vsel %vm437, %v340, 0.0
      %v450 = vsel %vm438, %v343, 0.0
      %v451 = vsel %vm439, %v348, 0.0
      %v452 = vsel %vm440, %v351, 0.0
      %v453 = vsel %vm441, %v356, 0.0
      %v454 = vsel %vm442, %v359, 0.0
      %v455 = vsel %vm443, %v364, 0.0
      %v456 = vsel %vm444, %v367, 0.0
      %v457 = vsel %vm445, %v372, 0.0
      %v458 = vsel %vm446, %v375, 0.0
      %v459 = vsel %vm447, %v380, 0.0
      %v460 = vsel %vm448, %v383, 0.0
      %vm461 = vcmask 31744
      %462 = vst.msk [vmem:[%s206] sm:$0xff] %vm461, %v449
      %463 = vst.msk [vmem:[%s206 + $0x8] sm:$0xff] %vm461, %v450
      %464 = vst.msk [vmem:[%s206 + $0x10] sm:$0xff] %vm461, %v451
      %465 = vst.msk [vmem:[%s206 + $0x18] sm:$0xff] %vm461, %v452
      %466 = vst.msk [vmem:[%s206 + $0x20] sm:$0xff] %vm461, %v453
      %467 = vst.msk [vmem:[%s206 + $0x28] sm:$0xff] %vm461, %v454
      %468 = vst.msk [vmem:[%s206 + $0x30] sm:$0xff] %vm461, %v455
      %469 = vst.msk [vmem:[%s206 + $0x38] sm:$0xff] %vm461, %v456
      %470 = vst.msk [vmem:[%s206 + $0x40] sm:$0xff] %vm461, %v457
      %471 = vst.msk [vmem:[%s206 + $0x48] sm:$0xff] %vm461, %v458
      %472 = vst.msk [vmem:[%s206 + $0x50] sm:$0xff] %vm461, %v459
      %473 = vst.msk [vmem:[%s206 + $0x58] sm:$0xff] %vm461, %v460
      %v474 = vsel %vm461, %v449, 0.0
      %v475 = vsel %vm461, %v450, 0.0
      %v476 = vadd.f32 %v474, %v475
      %v477 = vsel %vm461, %v451, 0.0
      %v478 = vadd.f32 %v476, %v477
      %v479 = vsel %vm461, %v452, 0.0
      %v480 = vadd.f32 %v478, %v479
      %v481 = vsel %vm461, %v453, 0.0
      %v482 = vadd.f32 %v480, %v481
      %v483 = vsel %vm461, %v454, 0.0
      %v484 = vadd.f32 %v482, %v483
      %v485 = vsel %vm461, %v455, 0.0
      %v486 = vadd.f32 %v484, %v485
      %v487 = vsel %vm461, %v456, 0.0
      %v488 = vadd.f32 %v486, %v487
      %v489 = vsel %vm461, %v457, 0.0
      %v490 = vadd.f32 %v488, %v489
      %v491 = vsel %vm461, %v458, 0.0
      %v492 = vadd.f32 %v490, %v491
      %v493 = vsel %vm461, %v459, 0.0
      %v494 = vadd.f32 %v492, %v493
      %v495 = vsel %vm461, %v460, 0.0
      %v496 = vadd.f32 %v494, %v495
      %v497 = vrot.slane %v496, 4
      %v498 = vadd.f32 %v496, %v497
      %v499 = vrot.slane %v498, 2
      %v500 = vadd.f32 %v498, %v499
      %v501 = vrot.slane %v500, 1
      %v502 = vadd.f32 %v500, %v501
      %v503 = vmul.f32 %v449, %v449
      %v504 = vmul.f32 %v450, %v450
      %v505 = vmul.f32 %v451, %v451
      %v506 = vmul.f32 %v452, %v452
      %v507 = vmul.f32 %v453, %v453
      %v508 = vmul.f32 %v454, %v454
      %v509 = vmul.f32 %v455, %v455
      %v510 = vmul.f32 %v456, %v456
      %v511 = vmul.f32 %v457, %v457
      %v512 = vmul.f32 %v458, %v458
      %v513 = vmul.f32 %v459, %v459
      %v514 = vmul.f32 %v460, %v460
      %v515 = vsel %vm461, %v503, 0.0
      %v516 = vsel %vm461, %v504, 0.0
      %v517 = vadd.f32 %v515, %v516
      %v518 = vsel %vm461, %v505, 0.0
      %v519 = vadd.f32 %v517, %v518
      %v520 = vsel %vm461, %v506, 0.0
      %v521 = vadd.f32 %v519, %v520
      %v522 = vsel %vm461, %v507, 0.0
      %v523 = vadd.f32 %v521, %v522
      %v524 = vsel %vm461, %v508, 0.0
      %v525 = vadd.f32 %v523, %v524
      %v526 = vsel %vm461, %v509, 0.0
      %v527 = vadd.f32 %v525, %v526
      %v528 = vsel %vm461, %v510, 0.0
      %v529 = vadd.f32 %v527, %v528
      %v530 = vsel %vm461, %v511, 0.0
      %v531 = vadd.f32 %v529, %v530
      %v532 = vsel %vm461, %v512, 0.0
      %v533 = vadd.f32 %v531, %v532
      %v534 = vsel %vm461, %v513, 0.0
      %v535 = vadd.f32 %v533, %v534
      %v536 = vsel %vm461, %v514, 0.0
      %v537 = vadd.f32 %v535, %v536
      %v538 = vrot.slane %v537, 4
      %v539 = vadd.f32 %v537, %v538
      %v540 = vrot.slane %v539, 2
      %v541 = vadd.f32 %v539, %v540
      %v542 = vrot.slane %v541, 1
      %v543 = vadd.f32 %v541, %v542
      %vm544 = vcmask 1040384
      %v545 = vsel %vm544, %v502, %v543
      %vm546 = vcmask 25600
      %547 = vst.msk [vmem:[%s211] sm:$0x3] %vm546, %v545
      %s548 = smul.u32 12, %s16
      %p549 = scmp.lt.s32.totalorder %s548, 71
      %s550 = scalar_select %p549, %s548, 71
      %s551 = smul.addr %s550, 8
      %s552 = scalar_lea.vmem %s3, %s551
      %p553 = scmp.lt.s32.totalorder %s16, 5
      %s554 = scalar_select %p553, %s16, 5
      %s555 = smul.addr %s554, 2
      %s556 = scalar_lea.vmem %s4, %s555
      // Predicated region
      $region33: #{tpu_custom_call.1} parent=31 // pred_check
        %p557 = pneg %p102
      $region34: #{tpu_custom_call.1} parent=31 // pred_check_branch
        %559 = sbr.rel (%p557) target = $region36
      $region35: #{tpu_custom_call.1} parent=31 // pred_region
        %s560 = smul.u32 12, %s16
      $region36: #{tpu_custom_call.1} parent=31 // pred_fallthru
        _
      // Predicated region
      $region37: #{tpu_custom_call.1} parent=31 // pred_check
        %p561 = pneg %p128
      $region38: #{tpu_custom_call.1} parent=31 // pred_check_branch
        %563 = sbr.rel (%p561) target = $region40
      $region39: #{tpu_custom_call.1} parent=31 // pred_region
        _
      $region40: #{tpu_custom_call.1} parent=31 // pred_fallthru
        _
    $region32: #{tpu_custom_call.1} parent=5 // pred_fallthru
      _
    %p564 = scmp.le.s32.totalorder 2, %s11
    // Predicated region
    $region41: #{tpu_custom_call.1} parent=5 // pred_check
      %p565 = pneg %p564
    $region42: #{tpu_custom_call.1} parent=5 // pred_check_branch
      %567 = sbr.rel (%p565) target = $region44
    $region43: #{tpu_custom_call.1} parent=5 // pred_region
      %s568 = ssub.s32 %s11, 2
      // Predicated region
      $region45: #{tpu_custom_call.1} parent=43 // pred_check
        %p569 = pneg %p108
      $region46: #{tpu_custom_call.1} parent=43 // pred_check_branch
        %571 = sbr.rel (%p569) target = $region48
      $region47: #{tpu_custom_call.1} parent=43 // pred_region
        %s572 = smul.u32 12, %s17
        %p573 = scmp.lt.s32.totalorder %s572, 71
        %s574 = scalar_select %p573, %s572, 71
        %s575 = smul.addr %s574, 8
        %s576 = scalar_lea.vmem %s3, %s575
      $region48: #{tpu_custom_call.1} parent=43 // pred_fallthru
        _
      // Predicated region
      $region49: #{tpu_custom_call.1} parent=43 // pred_check
        %p577 = pneg %p134
      $region50: #{tpu_custom_call.1} parent=43 // pred_check_branch
        %579 = sbr.rel (%p577) target = $region52
      $region51: #{tpu_custom_call.1} parent=43 // pred_region
        %p580 = scmp.lt.s32.totalorder %s17, 5
        %s581 = scalar_select %p580, %s17, 5
        %s582 = smul.addr %s581, 2
        %s583 = scalar_lea.vmem %s4, %s582
      $region52: #{tpu_custom_call.1} parent=43 // pred_fallthru
        _
    $region44: #{tpu_custom_call.1} parent=5 // pred_fallthru
      _
  $region6: #{tpu_custom_call.1} parent=0 // loop_footer
    %s15 = sadd.s32 1, %s11
  $region7: #{tpu_custom_call.1} parent=0 // loop_footer_branch
    %10 = sbr.rel target = $region3
  $region8: #{tpu_custom_call.1} parent=0 // loop_exit
    _

</llo_original>
